<compile_context>
chip_gen: v7x
topology: tpu7x:2x2x1
jax: 0.10.0
libtpu: 0.0.40
codegen_flags: <defaults>
</compile_context>

<pallas_src>
import jax
import jax.numpy as jnp
from jax.experimental import pallas as pl
from jax.experimental.pallas import tpu as pltpu

_MIB = 1024 * 1024


def _copy_kernel(x_ref, o_ref):
    # Identical (tc, tl) tiles for input and output; the truncation is done by
    # the out_shape / grid, so the hot path is an unmasked, lane-dense copy for
    # every block except the single tail block along each axis.
    o_ref[...] = x_ref[...]


def _round_up(x: int, m: int) -> int:
    return ((x + m - 1) // m) * m


def _ceil_div(x: int, m: int) -> int:
    return (x + m - 1) // m


def _block_budget():
    """Pick (target_block_bytes, vmem_limit_bytes) from the chip at trace time."""
    try:
        vmem = int(pltpu.get_tpu_info().vmem_capacity_bytes)
    except Exception:
        vmem = 64 * _MIB  # conservative fallback (v7x-sized VMEM)
    if vmem <= 64 * _MIB:
        # v7x: smaller VMEM but ~2.3x v6e HBM BW — bigger blocks amortize the
        # ~0.35 us per-grid-step overhead (worth ~10-20% on a pure copy).
        target_block = 4 * _MIB
    else:
        # v5e / v6e (128 MiB physical VMEM): 2 MiB blocks already sit at ~85%
        # of the copy roofline and stay inside v5e's 16 MiB scoped default.
        target_block = 2 * _MIB
    # input + output, double-buffered, plus headroom — passed explicitly so a
    # future block-size bump can never silently exceed the scoped default.
    vmem_limit = min(vmem // 2, max(16 * _MIB, 4 * target_block + 8 * _MIB))
    return target_block, vmem_limit


def chomp1d(x: jax.Array, chomp_size: int) -> jax.Array:
    """Pallas equivalent of Chomp1d.forward: x[:, :, :-chomp_size]."""
    assert chomp_size > 0, "chomp_size must be positive"
    n, c, l = x.shape
    l_out = l - chomp_size
    assert l_out > 0, "chomp_size must be smaller than the sequence length"

    itemsize = jnp.dtype(x.dtype).itemsize
    target_block_bytes, vmem_limit_bytes = _block_budget()

    # Fold N and C so the sublane axis is dense and the grid amortizes better.
    nc = n * c
    x2 = x.reshape(nc, l)

    # Lane tile: dtype-aware so each block-DMA row stays ~4 KiB contiguous
    # (f32->1024, bf16->2048, int8->4096); multiple of 128 so every store
    # except the single tail block is an unmasked vst.
    tl_target = 4096 // itemsize
    tl = min(tl_target, _round_up(l_out, 128))

    # Sublane tile: dtype-aware sublane quantum, sized to the per-chip budget.
    sub_m = max(8, 32 // itemsize)  # f32 -> 8, bf16 -> 16, int8 -> 32
    tc = max(sub_m, (target_block_bytes // (tl * itemsize)) // sub_m * sub_m)
    tc = min(tc, _round_up(nc, sub_m))

    grid_nc = _ceil_div(nc, tc)
    grid_l = _ceil_div(l_out, tl)

    # Megacore (v7x): Mosaic shards the leading "parallel" axis across the two
    # TensorCores. If everything fits in one block, split the larger axis in
    # two so both cores get work (costs one extra ~0.35 us step on 1-TC chips).
    if grid_nc == 1 and grid_l == 1:
        if nc >= 2 * sub_m:
            tc = _round_up(_ceil_div(nc, 2), sub_m)
            grid_nc = _ceil_div(nc, tc)
        elif l_out >= 256:
            tl = _round_up(_ceil_div(l_out, 2), 128)
            grid_l = _ceil_div(l_out, tl)

    # Put the axis with more blocks first so the 2-way megacore split is
    # balanced (no-op on single-TC v5e/v6e).
    if grid_l >= grid_nc:
        grid = (grid_l, grid_nc)
        index_map = lambda k, i: (i, k)
    else:
        grid = (grid_nc, grid_l)
        index_map = lambda i, k: (i, k)

    out2 = pl.pallas_call(
        _copy_kernel,
        out_shape=jax.ShapeDtypeStruct((nc, l_out), x.dtype),
        grid_spec=pltpu.PrefetchScalarGridSpec(
            num_scalar_prefetch=0,
            grid=grid,
            # Identical block shape + index map for input and output. The last
            # lane block's input read may cover chomped columns (real data) or
            # run past L (Pallas pads); the output write is clamped at l_out,
            # so semantics are exact.
            # Default double-buffering; bump to pipeline_mode=pl.Buffered(3)
            # only if xprof shows exposed DMA-start gaps at step boundaries.
            in_specs=[pl.BlockSpec((tc, tl), index_map)],
            out_specs=pl.BlockSpec((tc, tl), index_map),
        ),
        compiler_params=pltpu.CompilerParams(
            # Pure copy, no reduction axis: both grid axes are independent.
            dimension_semantics=("parallel", "parallel"),
            vmem_limit_bytes=vmem_limit_bytes,
        ),
        cost_estimate=pl.CostEstimate(
            flops=0,
            transcendentals=0,
            bytes_accessed=2 * nc * l_out * itemsize,
        ),
    )(x2)

    return out2.reshape(n, c, l_out)


if __name__ == "__main__":
    key = jax.random.PRNGKey(0)

    # Primary (module-sized) example: batch=2, channels=4, length=16, chomp=3.
    chomp_size = 3
    x = jax.random.normal(key, (2, 4, 16), dtype=jnp.float32)
    out = jax.block_until_ready(chomp1d(x, chomp_size))
    ref = x[:, :, :-chomp_size]
    assert out.shape == ref.shape, out.shape
    assert out.dtype == x.dtype
    assert jnp.array_equal(out, ref), "Pallas chomp output mismatch (f32 small)"

    # Extra coverage for partial blocks (l % tl != 0, l_out % tl != 0,
    # nc % tc != 0) and for bf16 lane/sublane quanta — locks in the masked
    # tail-block paths this design relies on.
    for shape, dtype, cs in [
        ((4, 130, 1155), jnp.float32, 3),   # nc=520, l_out=1152: partial blocks on both axes
        ((2, 8, 2200), jnp.bfloat16, 7),    # bf16: tl=2048, masked lane tail block
    ]:
        key, sub = jax.random.split(key)
        xt = jax.random.normal(sub, shape, dtype=jnp.float32).astype(dtype)
        got = jax.block_until_ready(chomp1d(xt, cs))
        want = xt[:, :, :-cs]
        assert got.shape == want.shape and got.dtype == xt.dtype
        assert jnp.array_equal(got, want), f"Pallas chomp output mismatch for {shape} {dtype}"

    print("KERNEL_OK")
</pallas_src>

<mosaic_0001>
module attributes {stable_mosaic.version = 11 : i64} {
  func.func @_copy_kernel(%arg0: i32, %arg1: i32, %arg2: memref<8x128xf32, #tpu.memory_space<vmem>>, %arg3: memref<8x128xf32, #tpu.memory_space<vmem>>) attributes {dimension_semantics = [#tpu.dimension_semantics<parallel>, #tpu.dimension_semantics<parallel>], iteration_bounds = array<i64: 1, 1>, scalar_prefetch = 0 : i64, scratch_operands = 0 : i64, tpu.core_type = #tpu.core_type<tc>, window_params = [{transform_indices = @transform_0, window_bounds = array<i64: 8, 128>}, {transform_indices = @transform_1, window_bounds = array<i64: 8, 128>}]} {
    %c0 = arith.constant 0 : index
    %c0_0 = arith.constant 0 : index
    %0 = vector.load %arg2[%c0, %c0_0] : memref<8x128xf32, #tpu.memory_space<vmem>>, vector<8x128xf32>
    %c0_1 = arith.constant 0 : index
    %c0_2 = arith.constant 0 : index
    %1 = vector.load %arg3[%c0_1, %c0_2] : memref<8x128xf32, #tpu.memory_space<vmem>>, vector<8x128xf32>
    tpu.vector_store %arg3[%c0_1, %c0_2], %0 {strides = array<i32>} : memref<8x128xf32, #tpu.memory_space<vmem>>, vector<8x128xf32>,
    return
  }
  func.func @transform_0(%arg0: i32, %arg1: i32) -> (i32, i32) {
    %c0_i32 = arith.constant 0 : i32
    return %arg1, %arg0 : i32, i32
  }
  func.func @transform_1(%arg0: i32, %arg1: i32) -> (i32, i32) {
    %c0_i32 = arith.constant 0 : i32
    return %arg1, %arg0 : i32, i32
  }
}

</mosaic_0001>

<llo_original>
// kernel: tpu_custom_call.1
$region0: #{tpu_custom_call.1}
  #allocation0 [shape = 'u32[]', space=smem, size = 0x4, offset = 0x4, fixed_abs, tag = 'smem constant byte address 0x4 - core index']
  #allocation1 [shape = 'u32[144,128]{1,0:T(1,128)}', space=vmem, size = 0x12000, scoped, tag = 'internal scratch']
  %s0 = inlined_call_operand.hbm [shape: f32[8,16], index: 0, kind: input, shape index: {}]
  %s1 = inlined_call_operand.hbm [shape: f32[8,13], index: 1, kind: output, shape index: {}]
  %s2 = sld [smem:[#allocation0]]
  $region18: #{tpu_custom_call.1} parent=0
    _
  %s4 = ssub.s32 1, %s2
  %s5 = scalar_select 0, %s4, %s2
  $region1: #{tpu_custom_call.1} parent=0
    #allocation2 [shape = 'u8[4096]{0}', space=vmem, size = 0x1000, scoped, tag = 'input window, operand 0, single buffered']
    #allocation3 [shape = 's32[1]{0}', space=sflag, size = 0x4, scoped, tag = 'scoped memory for tpu_custom_call.1']
    #allocation4 [shape = 's32[1]{0}', space=sflag, size = 0x4, scoped, tag = 'scoped memory for tpu_custom_call.1']
    #allocation5 [shape = 'u8[4096]{0}', space=vmem, size = 0x1000, scoped, tag = 'output window, operand 0, single buffered']
    %6 = vsyncpa [#allocation3], 0
    %7 = vsyncpa [#allocation4], 0
    // Predicated region
    $region2: #{tpu_custom_call.1} parent=1 // pred_check
      _
    $region3: #{tpu_custom_call.1} parent=1 // pred_check_branch
      %9 = sbr.rel (0) target = $region5
    $region4: #{tpu_custom_call.1} parent=1 // pred_region
      %s11 = ssub.s32 128, 128
      %12 = vsyncadd [#allocation3], %s11
      %s14 = sshll.u32 [#allocation2], 4
      %s15 = int_to_ptr.vmem [resolvable:$true] %s14
      %17 = dma.hbm_to_vmem [thread:$0]  %s0, 128, %s15, [#allocation3]
    $region5: #{tpu_custom_call.1} parent=1 // pred_fallthru
      _
    // Predicated region
    $region6: #{tpu_custom_call.1} parent=1 // pred_check
      _
    $region7: #{tpu_custom_call.1} parent=1 // pred_check_branch
      %19 = sbr.rel (0) target = $region9
    $region8: #{tpu_custom_call.1} parent=1 // pred_region
      %20 = dma.done [#allocation3], 128
    $region9: #{tpu_custom_call.1} parent=1 // pred_fallthru
      _
    %v21 = vld [vmem:[#allocation2] sm:$0xff]
    %22 = vst [vmem:[#allocation5] sm:$0xff] %v21
    // Predicated region
    $region10: #{tpu_custom_call.1} parent=1 // pred_check
      _
    $region11: #{tpu_custom_call.1} parent=1 // pred_check_branch
      %24 = sbr.rel (0) target = $region13
    $region12: #{tpu_custom_call.1} parent=1 // pred_region
      %s26 = ssub.s32 128, 128
      %27 = vsyncadd [#allocation4], %s26
      %s29 = sshll.u32 [#allocation5], 4
      %s30 = int_to_ptr.vmem [resolvable:$true] %s29
      %32 = dma.vmem_to_hbm [thread:$0]  %s30, 128, %s1, [#allocation4]
    $region13: #{tpu_custom_call.1} parent=1 // pred_fallthru
      _
    // Predicated region
    $region14: #{tpu_custom_call.1} parent=1 // pred_check
      _
    $region15: #{tpu_custom_call.1} parent=1 // pred_check_branch
      %34 = sbr.rel (0) target = $region17
    $region16: #{tpu_custom_call.1} parent=1 // pred_region
      %35 = dma.done [#allocation4], 128
    $region17: #{tpu_custom_call.1} parent=1 // pred_fallthru
      _
    %36 = vsyncpa [#allocation3], 1
    %37 = vsyncpa [#allocation4], 1

</llo_original>
